<compile_context>
chip_gen: v5e
topology: v5e:2x2
jax: 0.10.0
libtpu: 0.0.40
codegen_flags: <defaults>
</compile_context>

<pallas_src>
import functools

import jax
import jax.numpy as jnp
from jax.experimental import pallas as pl
from jax.experimental.pallas import tpu as pltpu

LANE = 128


def _round_up(x, m):
    return ((x + m - 1) // m) * m


def _tpu_params():
    """(physical VMEM bytes per core, # TensorCores per chip) — defensive query."""
    phys_vmem = 64 << 20      # conservative default if the query fails
    num_tc = 1
    try:
        phys_vmem = int(pltpu.get_tpu_info().vmem_capacity_bytes)
    except Exception:
        pass
    try:
        kind = jax.devices()[0].device_kind.lower()
        if "v7" in kind:      # v7x: 2 TensorCores per chip
            num_tc = 2
    except Exception:
        pass
    return phys_vmem, num_tc


def _choose_tiles(b, c, hw, itemsize, per_buffer_budget, num_tc):
    """Pick (b_tile, hw_tile).  Single-TC chips take the whole batch per block;
    multi-TC chips keep >=2 batch tiles so the 'parallel' axis can be sharded."""
    hw_cap = _round_up(hw, LANE)
    divisors = [d for d in range(b, 0, -1) if b % d == 0]
    if num_tc >= 2 and b >= 2:
        split = [d for d in divisors if b // d >= 2]
        if split:
            divisors = split
    for bt in divisors:
        bytes_per_pos = max(1, bt * c * itemsize)
        max_hw = per_buffer_budget // bytes_per_pos
        ht = min(hw_cap, (max_hw // LANE) * LANE)
        if ht >= LANE:
            return bt, ht
    return 1, LANE


def _pick_c_chunk(bt, c):
    """Bound accumulator vreg pressure (~3*bt*c_chunk/8 vregs live)."""
    target = max(8, 128 // max(1, bt))
    if c <= target:
        return c
    for cc in range(min(target, c), 7, -1):
        if c % cc == 0 and cc % 8 == 0:
            return cc
    for cc in range(min(target, c), 0, -1):
        if c % cc == 0:
            return cc
    return c


def _channel_attention_kernel(
    x_ref, w1t_ref, w2t_ref, o_ref, sum_acc, max_acc,
    *, hw_true: int, hw_tile: int, needs_mask: bool, c_chunk: int,
):
    # x_ref:   (bt, C, hw_tile)   current spatial tile (auto double-buffered)
    # w1t_ref: (C, Cr)            fc1 weight, pre-transposed (resident)
    # w2t_ref: (Cr, C)            fc2 weight, pre-transposed (resident)
    # o_ref:   (bt, 1, C)         written only on the last spatial step
    # sum_acc/max_acc: (bt, C, LANE) f32 deferred-lane-reduction accumulators
    s = pl.program_id(1)
    n_s = pl.num_programs(1)
    bt, c, _ = x_ref.shape
    n_chunks = hw_tile // LANE
    unroll = max(1, min(n_chunks, 8))

    @pl.when(s == 0)
    def _init():
        sum_acc[...] = jnp.zeros_like(sum_acc)
        max_acc[...] = jnp.full_like(max_acc, -jnp.inf)

    def accumulate(masked):
        # Steady-state work is pure VPU add/max on 128-lane chunks, loaded (and
        # upcast) one chunk at a time; the XLU lane reduce is deferred to the end.
        base = s * hw_tile
        for c0 in range(0, c, c_chunk):
            c1 = min(c0 + c_chunk, c)
            cs = slice(c0, c1)

            def body(j, carry):
                ps, pm = carry
                off = pl.multiple_of(j * LANE, LANE)
                xc = x_ref[:, cs, pl.ds(off, LANE)].astype(jnp.float32)
                if masked:
                    lanes = jax.lax.broadcasted_iota(jnp.int32, xc.shape, 2)
                    valid = (base + off + lanes) < hw_true
                    xs = jnp.where(valid, xc, 0.0)
                    xm = jnp.where(valid, xc, -jnp.inf)
                else:
                    xs, xm = xc, xc
                return ps + xs, jnp.maximum(pm, xm)

            ps, pm = jax.lax.fori_loop(
                0, n_chunks, body, (sum_acc[:, cs, :], max_acc[:, cs, :]),
                unroll=unroll)
            sum_acc[:, cs, :] = ps
            max_acc[:, cs, :] = pm

    if needs_mask:
        # Only the ragged tail step pays for iota/compare/select; steady-state
        # steps are pure add + max (pl.when cold path skipped at runtime).
        @pl.when(s != n_s - 1)
        def _steady():
            accumulate(False)

        @pl.when(s == n_s - 1)
        def _tail():
            accumulate(True)
    else:
        accumulate(False)

    @pl.when(s == n_s - 1)
    def _finalize():
        avg = jnp.sum(sum_acc[...], axis=-1) * (1.0 / hw_true)      # (bt, C)
        mx = jnp.max(max_acc[...], axis=-1)                         # (bt, C)
        # Fused shared MLP: one matmul pair serves both pooled vectors.
        v = jnp.concatenate([avg, mx], axis=0)                      # (2*bt, C)
        h = jnp.dot(v, w1t_ref[...], preferred_element_type=jnp.float32)
        h = jnp.maximum(h, 0.0)
        y = jnp.dot(h, w2t_ref[...], preferred_element_type=jnp.float32)
        out = y[:bt] + y[bt:]                                       # (bt, C)
        o_ref[...] = jax.nn.sigmoid(out).astype(o_ref.dtype)[:, None, :]


def channel_attention(x, w1, w2, *, hw_tile=None):
    """x: (B, C, H, W); w1: (C//r, C); w2: (C, C//r)  ->  (B, C, 1, 1)."""
    B, C, H, W = x.shape
    Cr = w1.shape[0]
    assert w1.shape == (Cr, C) and w2.shape == (C, Cr)
    HW = H * W
    itemsize = jnp.dtype(x.dtype).itemsize
    wsize = jnp.dtype(w1.dtype).itemsize

    # Pre-transpose the 1x1-conv weights once (outside the kernel).
    w1t = jnp.transpose(w1)  # (C, Cr)
    w2t = jnp.transpose(w2)  # (Cr, C)

    # Generation-aware budgets: ~17.5% of physical VMEM per input buffer
    # (double-buffered -> ~35%); vmem limit capped at 80% of physical VMEM
    # (~51 MiB on v7x's 64 MiB, ~100 MiB on v5e/v6e's 128 MiB).
    phys_vmem, num_tc = _tpu_params()
    per_buffer_budget = (phys_vmem * 35) // 200

    b_tile, auto_hw = _choose_tiles(B, C, HW, itemsize, per_buffer_budget, num_tc)
    if hw_tile is None:
        hw_tile = auto_hw
    else:
        assert hw_tile % LANE == 0, "hw_tile must be a multiple of 128"
        hw_tile = min(hw_tile, _round_up(HW, LANE))
    needs_mask = (HW % hw_tile) != 0
    c_chunk = _pick_c_chunk(b_tile, C)

    # No wrapper-side padding: the last (possibly partial) spatial block is
    # neutralized by the in-kernel tail mask, avoiding an extra HBM round trip
    # of the entire activation.
    x_flat = x.reshape(B, C, HW)
    grid = (B // b_tile, pl.cdiv(HW, hw_tile))

    est = (
        2 * b_tile * C * hw_tile * itemsize       # double-buffered input tiles
        + 2 * b_tile * C * LANE * 4               # f32 accumulators
        + 2 * 2 * C * Cr * wsize                  # resident weights (x2 buffers)
        + 2 * b_tile * C * itemsize               # output block
    )
    vmem_limit = int(max(16 << 20, min(est + (8 << 20), (phys_vmem * 8) // 10)))

    kernel = functools.partial(
        _channel_attention_kernel,
        hw_true=HW, hw_tile=hw_tile, needs_mask=needs_mask, c_chunk=c_chunk,
    )

    out = pl.pallas_call(
        kernel,
        out_shape=jax.ShapeDtypeStruct((B, 1, C), x.dtype),
        grid_spec=pltpu.PrefetchScalarGridSpec(
            num_scalar_prefetch=0,
            grid=grid,
            in_specs=[
                pl.BlockSpec((b_tile, C, hw_tile), lambda b, s: (b, 0, s)),
                pl.BlockSpec((C, Cr), lambda b, s: (0, 0)),
                pl.BlockSpec((Cr, C), lambda b, s: (0, 0)),
            ],
            out_specs=pl.BlockSpec((b_tile, 1, C), lambda b, s: (b, 0, 0)),
            scratch_shapes=[
                pltpu.VMEM((b_tile, C, LANE), jnp.float32),
                pltpu.VMEM((b_tile, C, LANE), jnp.float32),
            ],
        ),
        compiler_params=pltpu.CompilerParams(
            dimension_semantics=("parallel", "arbitrary"),
            vmem_limit_bytes=vmem_limit,
        ),
    )(x_flat, w1t, w2t)

    # TODO(synk): on v7x with B == 1 the 'parallel' batch axis has a single
    # tile, leaving one TensorCore idle; splitting the spatial reduction into
    # per-core partial accumulators (combined in finalize) would recover it.
    return out.reshape(B, C, 1, 1)


def channel_attention_ref(x, w1, w2):
    """Pure-JAX reference mirroring the PyTorch forward (computed in f32)."""
    xf = x.astype(jnp.float32)
    avg = jnp.mean(xf, axis=(2, 3))  # (B, C)
    mx = jnp.max(xf, axis=(2, 3))    # (B, C)

    w1f = w1.astype(jnp.float32)
    w2f = w2.astype(jnp.float32)

    def mlp(v):
        h = jnp.maximum(v @ w1f.T, 0.0)
        return h @ w2f.T

    out = mlp(avg) + mlp(mx)
    return jax.nn.sigmoid(out)[:, :, None, None]


if __name__ == "__main__":
    key = jax.random.PRNGKey(0)

    def check(out, ref, atol, rtol, name):
        assert out.shape == ref.shape, f"shape mismatch ({name})"
        assert jnp.allclose(out.astype(jnp.float32), ref, atol=atol, rtol=rtol), \
            f"mismatch vs reference ({name})"

    # Test 1: C=64, ratio=16, 16x16 spatial; hw_tile=128 forces a multi-step
    # spatial grid (accumulator carry across grid steps).
    B, C, H, W = 2, 64, 16, 16
    Cr = C // 16
    kx, k1, k2, key = jax.random.split(key, 4)
    x = jax.random.normal(kx, (B, C, H, W), dtype=jnp.float32)
    w1 = jax.random.normal(k1, (Cr, C), dtype=jnp.float32) * (1.0 / jnp.sqrt(C))
    w2 = jax.random.normal(k2, (C, Cr), dtype=jnp.float32) * (1.0 / jnp.sqrt(Cr))
    out = jax.block_until_ready(channel_attention(x, w1, w2, hw_tile=128))
    check(out, channel_attention_ref(x, w1, w2), 1e-5, 1e-5, "test 1")

    # Test 2: 7x7 spatial (HW=49 < 128) — pad-free partial block + tail mask.
    B2, C2, H2, W2 = 2, 32, 7, 7
    Cr2 = C2 // 8
    kx2, k12, k22, key = jax.random.split(key, 4)
    x2 = jax.random.normal(kx2, (B2, C2, H2, W2), dtype=jnp.float32)
    w12 = jax.random.normal(k12, (Cr2, C2), dtype=jnp.float32) * (1.0 / jnp.sqrt(C2))
    w22 = jax.random.normal(k22, (C2, Cr2), dtype=jnp.float32) * (1.0 / jnp.sqrt(Cr2))
    out2 = jax.block_until_ready(channel_attention(x2, w12, w22))
    check(out2, channel_attention_ref(x2, w12, w22), 1e-5, 1e-5, "test 2")

    # Test 3: B=1, C=256 exercises the C-sub-chunked accumulation and a ragged
    # last block (576 valid of 640) without any wrapper padding.
    B3, C3, H3, W3 = 1, 256, 24, 24
    Cr3 = C3 // 16
    kx3, k13, k23, key = jax.random.split(key, 4)
    x3 = jax.random.normal(kx3, (B3, C3, H3, W3), dtype=jnp.float32)
    w13 = jax.random.normal(k13, (Cr3, C3), dtype=jnp.float32) * (1.0 / jnp.sqrt(C3))
    w23 = jax.random.normal(k23, (C3, Cr3), dtype=jnp.float32) * (1.0 / jnp.sqrt(Cr3))
    out3 = jax.block_until_ready(channel_attention(x3, w13, w23))
    check(out3, channel_attention_ref(x3, w13, w23), 1e-4, 1e-4, "test 3")

    # Test 4: bf16 activations — per-chunk upcast path + bf16 output cast.
    B4, C4, H4, W4 = 2, 64, 9, 9
    Cr4 = C4 // 16
    kx4, k14, k24, key = jax.random.split(key, 4)
    x4 = jax.random.normal(kx4, (B4, C4, H4, W4), dtype=jnp.bfloat16)
    w14 = jax.random.normal(k14, (Cr4, C4), dtype=jnp.float32) * (1.0 / jnp.sqrt(C4))
    w24 = jax.random.normal(k24, (C4, Cr4), dtype=jnp.float32) * (1.0 / jnp.sqrt(Cr4))
    out4 = jax.block_until_ready(channel_attention(x4, w14, w24))
    check(out4, channel_attention_ref(x4, w14, w24), 1e-2, 1e-2, "test 4")

    print("KERNEL_OK")
</pallas_src>

<mosaic_0001>
module attributes {stable_mosaic.version = 11 : i64} {
  func.func @_channel_attention_kernel(%arg0: i32, %arg1: i32, %arg2: memref<2x64x128xf32, #tpu.memory_space<vmem>>, %arg3: memref<64x4xf32, #tpu.memory_space<vmem>>, %arg4: memref<4x64xf32, #tpu.memory_space<vmem>>, %arg5: memref<2x1x64xf32, #tpu.memory_space<vmem>>, %arg6: memref<2x64x128xf32, #tpu.memory_space<vmem>>, %arg7: memref<2x64x128xf32, #tpu.memory_space<vmem>>) attributes {dimension_semantics = [#tpu.dimension_semantics<parallel>, #tpu.dimension_semantics<arbitrary>], iteration_bounds = array<i64: 1, 2>, scalar_prefetch = 0 : i64, scratch_operands = 2 : i64, tpu.core_type = #tpu.core_type<tc>, window_params = [{transform_indices = @transform_0, window_bounds = array<i64: 2, 64, 128>}, {pipeline_mode = #tpu.pipeline_mode<synchronous>, transform_indices = @transform_1, window_bounds = array<i64: 64, 4>}, {pipeline_mode = #tpu.pipeline_mode<synchronous>, transform_indices = @transform_2, window_bounds = array<i64: 4, 64>}, {transform_indices = @transform_3, window_bounds = array<i64: 2, 1, 64>}]} {
    %c0_i32 = arith.constant 0 : i32
    %0 = arith.cmpi eq, %arg1, %c0_i32 : i32
    %1 = arith.extui %0 : i1 to i32
    %c0_i32_0 = arith.constant 0 : i32
    %2 = arith.cmpi ne, %1, %c0_i32_0 : i32
    scf.if %2 {
      %cst = arith.constant 0.000000e+00 : f32
      %16 = vector.broadcast %cst : f32 to vector<2x64x128xf32>
      %c0_17 = arith.constant 0 : index
      %c0_18 = arith.constant 0 : index
      %c0_19 = arith.constant 0 : index
      %17 = vector.load %arg6[%c0_17, %c0_18, %c0_19] : memref<2x64x128xf32, #tpu.memory_space<vmem>>, vector<2x64x128xf32>
      tpu.vector_store %arg6[%c0_17, %c0_18, %c0_19], %16 {strides = array<i32>} : memref<2x64x128xf32, #tpu.memory_space<vmem>>, vector<2x64x128xf32>,
      %cst_20 = arith.constant 0xFF800000 : f32
      %18 = vector.broadcast %cst_20 : f32 to vector<2x64x128xf32>
      %c0_21 = arith.constant 0 : index
      %c0_22 = arith.constant 0 : index
      %c0_23 = arith.constant 0 : index
      %19 = vector.load %arg7[%c0_21, %c0_22, %c0_23] : memref<2x64x128xf32, #tpu.memory_space<vmem>>, vector<2x64x128xf32>
      tpu.vector_store %arg7[%c0_21, %c0_22, %c0_23], %18 {strides = array<i32>} : memref<2x64x128xf32, #tpu.memory_space<vmem>>, vector<2x64x128xf32>,
    } else {
    }
    %c0 = arith.constant 0 : index
    %c0_1 = arith.constant 0 : index
    %c0_2 = arith.constant 0 : index
    %3 = vector.load %arg6[%c0, %c0_1, %c0_2] : memref<2x64x128xf32, #tpu.memory_space<vmem>>, vector<2x64x128xf32>
    %c0_3 = arith.constant 0 : index
    %c0_4 = arith.constant 0 : index
    %c0_5 = arith.constant 0 : index
    %4 = vector.load %arg7[%c0_3, %c0_4, %c0_5] : memref<2x64x128xf32, #tpu.memory_space<vmem>>, vector<2x64x128xf32>
    %c0_i32_6 = arith.constant 0 : i32
    %c128_i32 = arith.constant 128 : i32
    %5 = arith.muli %c0_i32_6, %c128_i32 : i32
    %6 = tpu.assume_multiple %5, 128 : i32
    %c0_7 = arith.constant 0 : index
    %c0_8 = arith.constant 0 : index
    %7 = arith.index_cast %6 : i32 to index
    %8 = vector.load %arg2[%c0_7, %c0_8, %7] : memref<2x64x128xf32, #tpu.memory_space<vmem>>, vector<2x64x128xf32>
    %9 = arith.addf %3, %8 : vector<2x64x128xf32>
    %10 = arith.maximumf %4, %8 : vector<2x64x128xf32>
    %c1_i32 = arith.constant 1 : i32
    %c0_9 = arith.constant 0 : index
    %c0_10 = arith.constant 0 : index
    %c0_11 = arith.constant 0 : index
    %11 = vector.load %arg6[%c0_9, %c0_10, %c0_11] : memref<2x64x128xf32, #tpu.memory_space<vmem>>, vector<2x64x128xf32>
    tpu.vector_store %arg6[%c0_9, %c0_10, %c0_11], %9 {strides = array<i32>} : memref<2x64x128xf32, #tpu.memory_space<vmem>>, vector<2x64x128xf32>,
    %c0_12 = arith.constant 0 : index
    %c0_13 = arith.constant 0 : index
    %c0_14 = arith.constant 0 : index
    %12 = vector.load %arg7[%c0_12, %c0_13, %c0_14] : memref<2x64x128xf32, #tpu.memory_space<vmem>>, vector<2x64x128xf32>
    tpu.vector_store %arg7[%c0_12, %c0_13, %c0_14], %10 {strides = array<i32>} : memref<2x64x128xf32, #tpu.memory_space<vmem>>, vector<2x64x128xf32>,
    %c1_i32_15 = arith.constant 1 : i32
    %13 = arith.cmpi eq, %arg1, %c1_i32_15 : i32
    %14 = arith.extui %13 : i1 to i32
    %c0_i32_16 = arith.constant 0 : i32
    %15 = arith.cmpi ne, %14, %c0_i32_16 : i32
    scf.if %15 {
      %c0_17 = arith.constant 0 : index
      %c0_18 = arith.constant 0 : index
      %c0_19 = arith.constant 0 : index
      %16 = vector.load %arg6[%c0_17, %c0_18, %c0_19] : memref<2x64x128xf32, #tpu.memory_space<vmem>>, vector<2x64x128xf32>
      %cst = arith.constant dense<0.000000e+00> : vector<2x64xf32>
      %17 = vector.multi_reduction <add>, %16, %cst [2] : vector<2x64x128xf32> to vector<2x64xf32>
      %cst_20 = arith.constant 3.906250e-03 : f32
      %18 = vector.broadcast %cst_20 : f32 to vector<2x64xf32>
      %19 = arith.mulf %17, %18 : vector<2x64xf32>
      %c0_21 = arith.constant 0 : index
      %c0_22 = arith.constant 0 : index
      %c0_23 = arith.constant 0 : index
      %20 = vector.load %arg7[%c0_21, %c0_22, %c0_23] : memref<2x64x128xf32, #tpu.memory_space<vmem>>, vector<2x64x128xf32>
      %cst_24 = arith.constant dense<0xFF800000> : vector<2x64xf32>
      %21 = vector.multi_reduction <maximumf>, %20, %cst_24 [2] : vector<2x64x128xf32> to vector<2x64xf32>
      %22 = tpu.concatenate %19, %21 in 0 : vector<2x64xf32>, vector<2x64xf32> -> vector<4x64xf32>
      %c0_25 = arith.constant 0 : index
      %c0_26 = arith.constant 0 : index
      %23 = vector.load %arg3[%c0_25, %c0_26] : memref<64x4xf32, #tpu.memory_space<vmem>>, vector<64x4xf32>
      %cst_27 = arith.constant dense<0.000000e+00> : vector<4x4xf32>
      %24 = tpu.matmul %22, %23, %cst_27 {dimension_numbers = #tpu.dot_dimension_numbers<[1], [0], [0], [1], [0, 0, 1, 1], [], []>} : vector<4x64xf32>, vector<64x4xf32>, vector<4x4xf32> -> vector<4x4xf32>
      %cst_28 = arith.constant 0.000000e+00 : f32
      %25 = vector.broadcast %cst_28 : f32 to vector<4x4xf32>
      %26 = arith.maximumf %24, %25 : vector<4x4xf32>
      %c0_29 = arith.constant 0 : index
      %c0_30 = arith.constant 0 : index
      %27 = vector.load %arg4[%c0_29, %c0_30] : memref<4x64xf32, #tpu.memory_space<vmem>>, vector<4x64xf32>
      %cst_31 = arith.constant dense<0.000000e+00> : vector<4x64xf32>
      %28 = tpu.matmul %26, %27, %cst_31 {dimension_numbers = #tpu.dot_dimension_numbers<[1], [0], [0], [1], [0, 0, 1, 1], [], []>} : vector<4x4xf32>, vector<4x64xf32>, vector<4x64xf32> -> vector<4x64xf32>
      %29 = vector.extract_strided_slice %28 {offsets = [0, 0], sizes = [2, 64], strides = [1, 1]} : vector<4x64xf32> to vector<2x64xf32>
      %30 = vector.extract_strided_slice %28 {offsets = [2, 0], sizes = [2, 64], strides = [1, 1]} : vector<4x64xf32> to vector<2x64xf32>
      %31 = arith.addf %29, %30 : vector<2x64xf32>
      %32 = arith.negf %31 : vector<2x64xf32>
      %33 = math.exp %32 : vector<2x64xf32>
      %cst_32 = arith.constant 1.000000e+00 : f32
      %34 = vector.broadcast %cst_32 : f32 to vector<2x64xf32>
      %35 = arith.addf %34, %33 : vector<2x64xf32>
      %36 = arith.divf %34, %35 : vector<2x64xf32>
      %37 = vector.shape_cast %36 : vector<2x64xf32> to vector<2x1x64xf32>
      %c0_33 = arith.constant 0 : index
      %c0_34 = arith.constant 0 : index
      %c0_35 = arith.constant 0 : index
      %38 = vector.load %arg5[%c0_33, %c0_34, %c0_35] : memref<2x1x64xf32, #tpu.memory_space<vmem>>, vector<2x1x64xf32>
      tpu.vector_store %arg5[%c0_33, %c0_34, %c0_35], %37 {strides = array<i32>} : memref<2x1x64xf32, #tpu.memory_space<vmem>>, vector<2x1x64xf32>,
    } else {
    }
    return
  }
  func.func @transform_0(%arg0: i32, %arg1: i32) -> (i32, i32, i32) {
    %c0_i32 = arith.constant 0 : i32
    %c0_i32_0 = arith.constant 0 : i32
    return %arg0, %c0_i32, %arg1 : i32, i32, i32
  }
  func.func @transform_1(%arg0: i32, %arg1: i32) -> (i32, i32) {
    %c0_i32 = arith.constant 0 : i32
    %c0_i32_0 = arith.constant 0 : i32
    %c0_i32_1 = arith.constant 0 : i32
    return %c0_i32, %c0_i32_0 : i32, i32
  }
  func.func @transform_2(%arg0: i32, %arg1: i32) -> (i32, i32) {
    %c0_i32 = arith.constant 0 : i32
    %c0_i32_0 = arith.constant 0 : i32
    %c0_i32_1 = arith.constant 0 : i32
    return %c0_i32, %c0_i32_0 : i32, i32
  }
  func.func @transform_3(%arg0: i32, %arg1: i32) -> (i32, i32, i32) {
    %c0_i32 = arith.constant 0 : i32
    %c0_i32_0 = arith.constant 0 : i32
    %c0_i32_1 = arith.constant 0 : i32
    return %arg0, %c0_i32, %c0_i32_0 : i32, i32, i32
  }
}

</mosaic_0001>

<llo_original>
// kernel: tpu_custom_call.1
$region0: #{tpu_custom_call.1}
  #allocation0 [shape = 'u32[]', space=smem, size = 0x4, offset = 0x4, fixed_abs, tag = 'smem constant byte address 0x4 - core index']
  #allocation1 [shape = 'u32[72,128]{1,0:T(1,128)}', space=vmem, size = 0x9000, scoped, tag = 'internal scratch']
  #allocation2 [shape = 'f32[2,64,128]{2,1,0:T(8,128)}', space=vmem, size = 0x10000, scoped, tag = 'scratch operand']
  #allocation3 [shape = 'f32[2,64,128]{2,1,0:T(8,128)}', space=vmem, size = 0x10000, scoped, tag = 'scratch operand']
  %s0 = inlined_call_operand.hbm [shape: f32[2,64,256], index: 0, kind: input, shape index: {}]
  %s1 = inlined_call_operand.vmem [shape: f32[64,4], index: 1, kind: input, shape index: {}]
  %s2 = inlined_call_operand.vmem [shape: f32[4,64], index: 2, kind: input, shape index: {}]
  %s3 = inlined_call_operand.hbm [shape: f32[2,1,64], index: 3, kind: output, shape index: {}]
  %s4 = sld [smem:[#allocation0]]
  $region57: #{tpu_custom_call.1} parent=0
    _
  %s6 = ssub.s32 1, %s4
  %s7 = scalar_select 0, %s6, %s4
  $region1: #{tpu_custom_call.1} parent=0
    #allocation4 [shape = 'u8[131072]{0}', space=vmem, size = 0x20000, scoped, tag = 'input window, operand 0']
    #allocation5 [shape = 's32[2]{0}', space=sflag, size = 0x8, scoped, tag = 'scoped memory for tpu_custom_call.1']
    #allocation6 [shape = 's32[2]{0}', space=sflag, size = 0x8, scoped, tag = 'scoped memory for tpu_custom_call.1']
    #allocation7 [shape = 'u8[1024]{0}', space=vmem, size = 0x400, scoped, tag = 'output window, operand 0, single buffered']
    %8 = vsyncpa [#allocation5], 0
    %s9 = scalar_lea.sflag [#allocation5], 1
    %10 = vsyncpa %s9, 0
    %11 = vsyncpa [#allocation6], 0
    loop: start=0, step=1, limit=4
    $region2: #{tpu_custom_call.1} parent=1 // loop_pre_header
      _
    $region3: #{tpu_custom_call.1} parent=1 // loop_header
      %s13 = sphi 0, %s17
      %p14 = scmp.ge.s32.totalorder %s13, 4
      %s20 = sphi 0, %s32
      %s21 = sphi 0, %s28
      %s22 = sphi 0, %s20
      %s23 = sphi 0, %s21
      %s24 = sphi 0, %s22
      %s25 = sphi 0, %s23
      %s37 = sphi 0, %s39
      %s40 = sphi 0, %s37
      %s41 = sphi 0, %s40
      %s57 = sphi 0, %s41
      %s61 = sphi 0, %s61
      %s63 = sphi 0, %s61
      %s64 = sphi 0, %s63
      %s78 = sphi 0, %s64
      %s82 = sphi 0, %s82
      %s84 = sphi 0, %s82
      %s85 = sphi 0, %s84
      %s99 = sphi 0, %s85
      %s105 = sphi 0, %s107
      %s108 = sphi 0, %s105
      %s109 = sphi 0, %s108
      %s125 = sphi 0, %s109
    $region4: #{tpu_custom_call.1} parent=1 // loop_header_branch
      %16 = sbr.rel (%p14) target = $region8
    $region5: #{tpu_custom_call.1} parent=1 // loop_body
      %s18 = ssub.s32 %s13, 1
      %s19 = ssub.s32 %s13, 2
      %s26 = sadd.s32 1, %s21
      %p27 = scmp.ge.s32.totalorder %s26, 2
      %s28 = scalar_select %p27, 0, %s26
      %s29 = sadd.s32 1, %s20
      %s30 = scalar_select %p27, %s29, %s20
      %p31 = scmp.ge.s32.totalorder %s30, 1
      %s32 = scalar_select %p31, 0, %s30
      %s33 = ssub.s32 %s20, %s32
      %s34 = ssub.s32 %s21, %s28
      %s35 = sor.u32 %s33, %s34
      %p36 = scmp.eq.s32.totalorder %s35, 0
      %s38 = sadd.s32 %s37, 1
      %s39 = scalar_select %p36, %s37, %s38
      %p42 = pneg %p36
      %p43 = scmp.eq.s32.totalorder %s13, 1
      %p44 = por %p42, %p43
      %p45 = scmp.ne.s32.totalorder %s37, %s40
      %p46 = scmp.eq.s32.totalorder %s13, 0
      %p47 = por %p45, %p46
      %p48 = scmp.ne.s32.totalorder %s37, %s40
      %p49 = scmp.eq.s32.totalorder %s18, 1
      %p50 = por %p48, %p49
      %p51 = scmp.ne.s32.totalorder %s40, %s41
      %p52 = scmp.eq.s32.totalorder %s18, 0
      %p53 = por %p51, %p52
      %p54 = scmp.ne.s32.totalorder %s40, %s41
      %p55 = scmp.eq.s32.totalorder %s19, 1
      %p56 = por %p54, %p55
      %p58 = scmp.ne.s32.totalorder %s41, %s57
      %p59 = scmp.eq.s32.totalorder %s19, 0
      %p60 = por %p58, %p59
      %s62 = sadd.s32 %s61, 1
      %p65 = scmp.eq.s32.totalorder %s13, 1
      %p66 = scmp.ne.s32.totalorder %s61, %s63
      %p67 = scmp.eq.s32.totalorder %s13, 0
      %p68 = por %p66, %p67
      %p69 = scmp.ne.s32.totalorder %s61, %s63
      %p70 = scmp.eq.s32.totalorder %s18, 1
      %p71 = por %p69, %p70
      %p72 = scmp.ne.s32.totalorder %s63, %s64
      %p73 = scmp.eq.s32.totalorder %s18, 0
      %p74 = por %p72, %p73
      %p75 = scmp.ne.s32.totalorder %s63, %s64
      %p76 = scmp.eq.s32.totalorder %s19, 1
      %p77 = por %p75, %p76
      %p79 = scmp.ne.s32.totalorder %s64, %s78
      %p80 = scmp.eq.s32.totalorder %s19, 0
      %p81 = por %p79, %p80
      %s83 = sadd.s32 %s82, 1
      %p86 = scmp.eq.s32.totalorder %s13, 1
      %p87 = scmp.ne.s32.totalorder %s82, %s84
      %p88 = scmp.eq.s32.totalorder %s13, 0
      %p89 = por %p87, %p88
      %p90 = scmp.ne.s32.totalorder %s82, %s84
      %p91 = scmp.eq.s32.totalorder %s18, 1
      %p92 = por %p90, %p91
      %p93 = scmp.ne.s32.totalorder %s84, %s85
      %p94 = scmp.eq.s32.totalorder %s18, 0
      %p95 = por %p93, %p94
      %p96 = scmp.ne.s32.totalorder %s84, %s85
      %p97 = scmp.eq.s32.totalorder %s19, 1
      %p98 = por %p96, %p97
      %p100 = scmp.ne.s32.totalorder %s85, %s99
      %p101 = scmp.eq.s32.totalorder %s19, 0
      %p102 = por %p100, %p101
      %s103 = ssub.s32 %s20, %s32
      %p104 = scmp.eq.s32.totalorder %s103, 0
      %s106 = sadd.s32 %s105, 1
      %s107 = scalar_select %p104, %s105, %s106
      %p110 = pneg %p104
      %p111 = scmp.eq.s32.totalorder %s13, 1
      %p112 = por %p110, %p111
      %p113 = scmp.ne.s32.totalorder %s105, %s108
      %p114 = scmp.eq.s32.totalorder %s13, 0
      %p115 = por %p113, %p114
      %p116 = scmp.ne.s32.totalorder %s105, %s108
      %p117 = scmp.eq.s32.totalorder %s18, 1
      %p118 = por %p116, %p117
      %p119 = scmp.ne.s32.totalorder %s108, %s109
      %p120 = scmp.eq.s32.totalorder %s18, 0
      %p121 = por %p119, %p120
      %p122 = scmp.ne.s32.totalorder %s108, %s109
      %p123 = scmp.eq.s32.totalorder %s19, 1
      %p124 = por %p122, %p123
      %p126 = scmp.ne.s32.totalorder %s109, %s125
      %p127 = scmp.eq.s32.totalorder %s19, 0
      %p128 = por %p126, %p127
      %p129 = scmp.le.s32.totalorder 1, %s13
      %p130 = scmp.lt.s32.totalorder %s13, 3
      %p131 = pnand %p129, %p130
      %p132 = pneg %p131
      // Predicated region
      $region9: #{tpu_custom_call.1} parent=5 // pred_check
        _
      $region10: #{tpu_custom_call.1} parent=5 // pred_check_branch
        %134 = sbr.rel (%p131) target = $region12
      $region11: #{tpu_custom_call.1} parent=5 // pred_region
        %s135 = ssub.s32 %s13, 1
        // Predicated region
        $region13: #{tpu_custom_call.1} parent=11 // pred_check
          %p136 = pneg %p74
        $region14: #{tpu_custom_call.1} parent=11 // pred_check_branch
          %138 = sbr.rel (%p136) target = $region16
        $region15: #{tpu_custom_call.1} parent=11 // pred_region
          _
        $region16: #{tpu_custom_call.1} parent=11 // pred_fallthru
          _
        // Predicated region
        $region17: #{tpu_custom_call.1} parent=11 // pred_check
          %p139 = pneg %p95
        $region18: #{tpu_custom_call.1} parent=11 // pred_check_branch
          %141 = sbr.rel (%p139) target = $region20
        $region19: #{tpu_custom_call.1} parent=11 // pred_region
          _
        $region20: #{tpu_custom_call.1} parent=11 // pred_fallthru
          _
      $region12: #{tpu_custom_call.1} parent=5 // pred_fallthru
        _
      %p142 = scmp.lt.s32.totalorder %s13, 2
      // Predicated region
      $region21: #{tpu_custom_call.1} parent=5 // pred_check
        %p143 = pneg %p142
      $region22: #{tpu_custom_call.1} parent=5 // pred_check_branch
        %145 = sbr.rel (%p143) target = $region24
      $region23: #{tpu_custom_call.1} parent=5 // pred_region
        // Predicated region
        $region25: #{tpu_custom_call.1} parent=23 // pred_check
          %p146 = pneg %p47
        $region26: #{tpu_custom_call.1} parent=23 // pred_check_branch
          %148 = sbr.rel (%p146) target = $region28
        $region27: #{tpu_custom_call.1} parent=23 // pred_region
          %s149 = sand.u32 %s37, 1
          %s150 = scalar_lea.sflag [#allocation5], %s149
          %s151 = sand.u32 %s37, 1
          %s152 = smul.addr %s151, 128
          %s153 = scalar_lea.vmem [#allocation4], %s152
          %s154 = smul.u32 2, %s20
          %156 = vsyncadd %s150, 0
          %s157 = smul.addr %s154, 16
          %s158 = sadd.s32 %s21, %s157
          %s159 = smul.addr %s158, 8
          %s160 = scalar_lea.hbm %s0, %s159
          %s161 = sshll.u32 %s160, 4
          %s162 = int_to_ptr.hbm [resolvable:$true] %s161
          %s163 = sshll.u32 %s153, 4
          %s164 = int_to_ptr.vmem [resolvable:$true] %s163
          %169 = dma.hbm_to_vmem [thread:$0]  %s162, 2048, %s164, %s150, 256, 128, 8
        $region28: #{tpu_custom_call.1} parent=23 // pred_fallthru
          _
      $region24: #{tpu_custom_call.1} parent=5 // pred_fallthru
        _
      %p170 = scmp.le.s32.totalorder 1, %s13
      %p171 = scmp.lt.s32.totalorder %s13, 3
      %p172 = pnand %p170, %p171
      %p173 = pneg %p172
      // Predicated region
      $region29: #{tpu_custom_call.1} parent=5 // pred_check
        _
      $region30: #{tpu_custom_call.1} parent=5 // pred_check_branch
        %175 = sbr.rel (%p172) target = $region32
      $region31: #{tpu_custom_call.1} parent=5 // pred_region
        %s176 = ssub.s32 %s13, 1
        %s177 = sand.u32 %s40, 1
        %s178 = scalar_lea.sflag [#allocation5], %s177
        %s179 = sand.u32 %s40, 1
        %s180 = smul.addr %s179, 128
        %s181 = scalar_lea.vmem [#allocation4], %s180
        // Predicated region
        $region33: #{tpu_custom_call.1} parent=31 // pred_check
          %p182 = pneg %p53
        $region34: #{tpu_custom_call.1} parent=31 // pred_check_branch
          %184 = sbr.rel (%p182) target = $region36
        $region35: #{tpu_custom_call.1} parent=31 // pred_region
          %186 = dma.done %s178, 2048
        $region36: #{tpu_custom_call.1} parent=31 // pred_fallthru
          _
        %s187 = sand.u32 %s40, 1
        %s188 = scalar_lea.sflag [#allocation5], %s187
        %s189 = sand.u32 %s40, 1
        %s190 = smul.addr %s189, 128
        %s191 = scalar_lea.vmem [#allocation4], %s190
        %p192 = pneg %p53
        %p193 = pneg %p50
        %p194 = pneg %p74
        %p195 = pneg %p71
        %p196 = pneg %p95
        %p197 = pneg %p92
        %p198 = pneg %p121
        %p199 = pneg %p118
        %s200 = smul.u32 2, %s22
        %s201 = smul.u32 2, %s22
        %p202 = scmp.eq.s32.totalorder %s23, 0
        // Predicated region
        $region37: #{tpu_custom_call.1} parent=31 // pred_check
          %p203 = pneg %p202
        $region38: #{tpu_custom_call.1} parent=31 // pred_check_branch
          %205 = sbr.rel (%p203) target = $region40
        $region39: #{tpu_custom_call.1} parent=31 // pred_region
          %206 = vst [vmem:[#allocation2] sm:$0xff] 0.0
          %207 = vst [vmem:[#allocation2 + $0x8] sm:$0xff] 0.0
          %208 = vst [vmem:[#allocation2 + $0x10] sm:$0xff] 0.0
          %209 = vst [vmem:[#allocation2 + $0x18] sm:$0xff] 0.0
          %210 = vst [vmem:[#allocation2 + $0x20] sm:$0xff] 0.0
          %211 = vst [vmem:[#allocation2 + $0x28] sm:$0xff] 0.0
          %212 = vst [vmem:[#allocation2 + $0x30] sm:$0xff] 0.0
          %213 = vst [vmem:[#allocation2 + $0x38] sm:$0xff] 0.0
          %214 = vst [vmem:[#allocation2 + $0x40] sm:$0xff] 0.0
          %215 = vst [vmem:[#allocation2 + $0x48] sm:$0xff] 0.0
          %216 = vst [vmem:[#allocation2 + $0x50] sm:$0xff] 0.0
          %217 = vst [vmem:[#allocation2 + $0x58] sm:$0xff] 0.0
          %218 = vst [vmem:[#allocation2 + $0x60] sm:$0xff] 0.0
          %219 = vst [vmem:[#allocation2 + $0x68] sm:$0xff] 0.0
          %220 = vst [vmem:[#allocation2 + $0x70] sm:$0xff] 0.0
          %221 = vst [vmem:[#allocation2 + $0x78] sm:$0xff] 0.0
          %222 = vst [vmem:[#allocation3] sm:$0xff] -inf
          %223 = vst [vmem:[#allocation3 + $0x8] sm:$0xff] -inf
          %224 = vst [vmem:[#allocation3 + $0x10] sm:$0xff] -inf
          %225 = vst [vmem:[#allocation3 + $0x18] sm:$0xff] -inf
          %226 = vst [vmem:[#allocation3 + $0x20] sm:$0xff] -inf
          %227 = vst [vmem:[#allocation3 + $0x28] sm:$0xff] -inf
          %228 = vst [vmem:[#allocation3 + $0x30] sm:$0xff] -inf
          %229 = vst [vmem:[#allocation3 + $0x38] sm:$0xff] -inf
          %230 = vst [vmem:[#allocation3 + $0x40] sm:$0xff] -inf
          %231 = vst [vmem:[#allocation3 + $0x48] sm:$0xff] -inf
          %232 = vst [vmem:[#allocation3 + $0x50] sm:$0xff] -inf
          %233 = vst [vmem:[#allocation3 + $0x58] sm:$0xff] -inf
          %234 = vst [vmem:[#allocation3 + $0x60] sm:$0xff] -inf
          %235 = vst [vmem:[#allocation3 + $0x68] sm:$0xff] -inf
          %236 = vst [vmem:[#allocation3 + $0x70] sm:$0xff] -inf
          %237 = vst [vmem:[#allocation3 + $0x78] sm:$0xff] -inf
        $region40: #{tpu_custom_call.1} parent=31 // pred_fallthru
          _
        %v238 = vld [vmem:[#allocation2] sm:$0xff]
        %v239 = vld [vmem:[#allocation2 + $0x8] sm:$0xff]
        %v240 = vld [vmem:[#allocation2 + $0x10] sm:$0xff]
        %v241 = vld [vmem:[#allocation2 + $0x18] sm:$0xff]
        %v242 = vld [vmem:[#allocation2 + $0x20] sm:$0xff]
        %v243 = vld [vmem:[#allocation2 + $0x28] sm:$0xff]
        %v244 = vld [vmem:[#allocation2 + $0x30] sm:$0xff]
        %v245 = vld [vmem:[#allocation2 + $0x38] sm:$0xff]
        %v246 = vld [vmem:[#allocation2 + $0x40] sm:$0xff]
        %v247 = vld [vmem:[#allocation2 + $0x48] sm:$0xff]
        %v248 = vld [vmem:[#allocation2 + $0x50] sm:$0xff]
        %v249 = vld [vmem:[#allocation2 + $0x58] sm:$0xff]
        %v250 = vld [vmem:[#allocation2 + $0x60] sm:$0xff]
        %v251 = vld [vmem:[#allocation2 + $0x68] sm:$0xff]
        %v252 = vld [vmem:[#allocation2 + $0x70] sm:$0xff]
        %v253 = vld [vmem:[#allocation2 + $0x78] sm:$0xff]
        %v254 = vld [vmem:[#allocation3] sm:$0xff]
        %v255 = vld [vmem:[#allocation3 + $0x8] sm:$0xff]
        %v256 = vld [vmem:[#allocation3 + $0x10] sm:$0xff]
        %v257 = vld [vmem:[#allocation3 + $0x18] sm:$0xff]
        %v258 = vld [vmem:[#allocation3 + $0x20] sm:$0xff]
        %v259 = vld [vmem:[#allocation3 + $0x28] sm:$0xff]
        %v260 = vld [vmem:[#allocation3 + $0x30] sm:$0xff]
        %v261 = vld [vmem:[#allocation3 + $0x38] sm:$0xff]
        %v262 = vld [vmem:[#allocation3 + $0x40] sm:$0xff]
        %v263 = vld [vmem:[#allocation3 + $0x48] sm:$0xff]
        %v264 = vld [vmem:[#allocation3 + $0x50] sm:$0xff]
        %v265 = vld [vmem:[#allocation3 + $0x58] sm:$0xff]
        %v266 = vld [vmem:[#allocation3 + $0x60] sm:$0xff]
        %v267 = vld [vmem:[#allocation3 + $0x68] sm:$0xff]
        %v268 = vld [vmem:[#allocation3 + $0x70] sm:$0xff]
        %v269 = vld [vmem:[#allocation3 + $0x78] sm:$0xff]
        %v270 = vld [vmem:[%s181] sm:$0xff]
        %v271 = vld [vmem:[%s181 + $0x8] sm:$0xff]
        %v272 = vld [vmem:[%s181 + $0x10] sm:$0xff]
        %v273 = vld [vmem:[%s181 + $0x18] sm:$0xff]
        %v274 = vld [vmem:[%s181 + $0x20] sm:$0xff]
        %v275 = vld [vmem:[%s181 + $0x28] sm:$0xff]
        %v276 = vld [vmem:[%s181 + $0x30] sm:$0xff]
        %v277 = vld [vmem:[%s181 + $0x38] sm:$0xff]
        %v278 = vld [vmem:[%s181 + $0x40] sm:$0xff]
        %v279 = vld [vmem:[%s181 + $0x48] sm:$0xff]
        %v280 = vld [vmem:[%s181 + $0x50] sm:$0xff]
        %v281 = vld [vmem:[%s181 + $0x58] sm:$0xff]
        %v282 = vld [vmem:[%s181 + $0x60] sm:$0xff]
        %v283 = vld [vmem:[%s181 + $0x68] sm:$0xff]
        %v284 = vld [vmem:[%s181 + $0x70] sm:$0xff]
        %v285 = vld [vmem:[%s181 + $0x78] sm:$0xff]
        %v286 = vadd.f32 %v238, %v270
        %v287 = vadd.f32 %v239, %v271
        %v288 = vadd.f32 %v240, %v272
        %v289 = vadd.f32 %v241, %v273
        %v290 = vadd.f32 %v242, %v274
        %v291 = vadd.f32 %v243, %v275
        %v292 = vadd.f32 %v244, %v276
        %v293 = vadd.f32 %v245, %v277
        %v294 = vadd.f32 %v246, %v278
        %v295 = vadd.f32 %v247, %v279
        %v296 = vadd.f32 %v248, %v280
        %v297 = vadd.f32 %v249, %v281
        %v298 = vadd.f32 %v250, %v282
        %v299 = vadd.f32 %v251, %v283
        %v300 = vadd.f32 %v252, %v284
        %v301 = vadd.f32 %v253, %v285
        %v302 = vmax.f32 %v254, %v270
        %v303 = vmax.f32 %v255, %v271
        %v304 = vmax.f32 %v256, %v272
        %v305 = vmax.f32 %v257, %v273
        %v306 = vmax.f32 %v258, %v274
        %v307 = vmax.f32 %v259, %v275
        %v308 = vmax.f32 %v260, %v276
        %v309 = vmax.f32 %v261, %v277
        %v310 = vmax.f32 %v262, %v278
        %v311 = vmax.f32 %v263, %v279
        %v312 = vmax.f32 %v264, %v280
        %v313 = vmax.f32 %v265, %v281
        %v314 = vmax.f32 %v266, %v282
        %v315 = vmax.f32 %v267, %v283
        %v316 = vmax.f32 %v268, %v284
        %v317 = vmax.f32 %v269, %v285
        %318 = vst [vmem:[#allocation2] sm:$0xff] %v286
        %319 = vst [vmem:[#allocation2 + $0x8] sm:$0xff] %v287
        %320 = vst [vmem:[#allocation2 + $0x10] sm:$0xff] %v288
        %321 = vst [vmem:[#allocation2 + $0x18] sm:$0xff] %v289
        %322 = vst [vmem:[#allocation2 + $0x20] sm:$0xff] %v290
        %323 = vst [vmem:[#allocation2 + $0x28] sm:$0xff] %v291
        %324 = vst [vmem:[#allocation2 + $0x30] sm:$0xff] %v292
        %325 = vst [vmem:[#allocation2 + $0x38] sm:$0xff] %v293
        %326 = vst [vmem:[#allocation2 + $0x40] sm:$0xff] %v294
        %327 = vst [vmem:[#allocation2 + $0x48] sm:$0xff] %v295
        %328 = vst [vmem:[#allocation2 + $0x50] sm:$0xff] %v296
        %329 = vst [vmem:[#allocation2 + $0x58] sm:$0xff] %v297
        %330 = vst [vmem:[#allocation2 + $0x60] sm:$0xff] %v298
        %331 = vst [vmem:[#allocation2 + $0x68] sm:$0xff] %v299
        %332 = vst [vmem:[#allocation2 + $0x70] sm:$0xff] %v300
        %333 = vst [vmem:[#allocation2 + $0x78] sm:$0xff] %v301
        %334 = vst [vmem:[#allocation3] sm:$0xff] %v302
        %335 = vst [vmem:[#allocation3 + $0x8] sm:$0xff] %v303
        %336 = vst [vmem:[#allocation3 + $0x10] sm:$0xff] %v304
        %337 = vst [vmem:[#allocation3 + $0x18] sm:$0xff] %v305
        %338 = vst [vmem:[#allocation3 + $0x20] sm:$0xff] %v306
        %339 = vst [vmem:[#allocation3 + $0x28] sm:$0xff] %v307
        %340 = vst [vmem:[#allocation3 + $0x30] sm:$0xff] %v308
        %341 = vst [vmem:[#allocation3 + $0x38] sm:$0xff] %v309
        %342 = vst [vmem:[#allocation3 + $0x40] sm:$0xff] %v310
        %343 = vst [vmem:[#allocation3 + $0x48] sm:$0xff] %v311
        %344 = vst [vmem:[#allocation3 + $0x50] sm:$0xff] %v312
        %345 = vst [vmem:[#allocation3 + $0x58] sm:$0xff] %v313
        %346 = vst [vmem:[#allocation3 + $0x60] sm:$0xff] %v314
        %347 = vst [vmem:[#allocation3 + $0x68] sm:$0xff] %v315
        %348 = vst [vmem:[#allocation3 + $0x70] sm:$0xff] %v316
        %349 = vst [vmem:[#allocation3 + $0x78] sm:$0xff] %v317
        %p350 = scmp.eq.s32.totalorder %s23, 1
        // Predicated region
        $region41: #{tpu_custom_call.1} parent=31 // pred_check
          %p351 = pneg %p350
        $region42: #{tpu_custom_call.1} parent=31 // pred_check_branch
          %353 = sbr.rel (%p351) target = $region44
        $region43: #{tpu_custom_call.1} parent=31 // pred_region
          %v354 = vld [vmem:[#allocation2] sm:$0xff]
          %v355 = vld [vmem:[#allocation2 + $0x8] sm:$0xff]
          %v356 = vld [vmem:[#allocation2 + $0x10] sm:$0xff]
          %v357 = vld [vmem:[#allocation2 + $0x18] sm:$0xff]
          %v358 = vld [vmem:[#allocation2 + $0x20] sm:$0xff]
          %v359 = vld [vmem:[#allocation2 + $0x28] sm:$0xff]
          %v360 = vld [vmem:[#allocation2 + $0x30] sm:$0xff]
          %v361 = vld [vmem:[#allocation2 + $0x38] sm:$0xff]
          %v362 = vld [vmem:[#allocation2 + $0x40] sm:$0xff]
          %v363 = vld [vmem:[#allocation2 + $0x48] sm:$0xff]
          %v364 = vld [vmem:[#allocation2 + $0x50] sm:$0xff]
          %v365 = vld [vmem:[#allocation2 + $0x58] sm:$0xff]
          %v366 = vld [vmem:[#allocation2 + $0x60] sm:$0xff]
          %v367 = vld [vmem:[#allocation2 + $0x68] sm:$0xff]
          %v368 = vld [vmem:[#allocation2 + $0x70] sm:$0xff]
          %v369 = vld [vmem:[#allocation2 + $0x78] sm:$0xff]
          %370 = vadd.xlane.f32.xlu0 %v354
          %v371 = vpop.xlane.xlu0 %370
          %372 = vadd.xlane.f32.xlu0 %v355
          %v373 = vpop.xlane.xlu0 %372
          %374 = vadd.xlane.f32.xlu0 %v356
          %v375 = vpop.xlane.xlu0 %374
          %376 = vadd.xlane.f32.xlu0 %v357
          %v377 = vpop.xlane.xlu0 %376
          %378 = vadd.xlane.f32.xlu0 %v358
          %v379 = vpop.xlane.xlu0 %378
          %380 = vadd.xlane.f32.xlu0 %v359
          %v381 = vpop.xlane.xlu0 %380
          %382 = vadd.xlane.f32.xlu0 %v360
          %v383 = vpop.xlane.xlu0 %382
          %384 = vadd.xlane.f32.xlu0 %v361
          %v385 = vpop.xlane.xlu0 %384
          %386 = vadd.xlane.f32.xlu0 %v362
          %v387 = vpop.xlane.xlu0 %386
          %388 = vadd.xlane.f32.xlu0 %v363
          %v389 = vpop.xlane.xlu0 %388
          %390 = vadd.xlane.f32.xlu0 %v364
          %v391 = vpop.xlane.xlu0 %390
          %392 = vadd.xlane.f32.xlu0 %v365
          %v393 = vpop.xlane.xlu0 %392
          %394 = vadd.xlane.f32.xlu0 %v366
          %v395 = vpop.xlane.xlu0 %394
          %396 = vadd.xlane.f32.xlu0 %v367
          %v397 = vpop.xlane.xlu0 %396
          %398 = vadd.xlane.f32.xlu0 %v368
          %v399 = vpop.xlane.xlu0 %398
          %400 = vadd.xlane.f32.xlu0 %v369
          %v401 = vpop.xlane.xlu0 %400
          %v402 = vmul.f32 %v371, 0.00390625
          %v403 = vmul.f32 %v373, 0.00390625
          %v404 = vmul.f32 %v375, 0.00390625
          %v405 = vmul.f32 %v377, 0.00390625
          %v406 = vmul.f32 %v379, 0.00390625
          %v407 = vmul.f32 %v381, 0.00390625
          %v408 = vmul.f32 %v383, 0.00390625
          %v409 = vmul.f32 %v385, 0.00390625
          %v410 = vmul.f32 %v387, 0.00390625
          %v411 = vmul.f32 %v389, 0.00390625
          %v412 = vmul.f32 %v391, 0.00390625
          %v413 = vmul.f32 %v393, 0.00390625
          %v414 = vmul.f32 %v395, 0.00390625
          %v415 = vmul.f32 %v397, 0.00390625
          %v416 = vmul.f32 %v399, 0.00390625
          %v417 = vmul.f32 %v401, 0.00390625
          %v418 = vld [vmem:[#allocation3] sm:$0xff]
          %v419 = vld [vmem:[#allocation3 + $0x8] sm:$0xff]
          %v420 = vld [vmem:[#allocation3 + $0x10] sm:$0xff]
          %v421 = vld [vmem:[#allocation3 + $0x18] sm:$0xff]
          %v422 = vld [vmem:[#allocation3 + $0x20] sm:$0xff]
          %v423 = vld [vmem:[#allocation3 + $0x28] sm:$0xff]
          %v424 = vld [vmem:[#allocation3 + $0x30] sm:$0xff]
          %v425 = vld [vmem:[#allocation3 + $0x38] sm:$0xff]
          %v426 = vld [vmem:[#allocation3 + $0x40] sm:$0xff]
          %v427 = vld [vmem:[#allocation3 + $0x48] sm:$0xff]
          %v428 = vld [vmem:[#allocation3 + $0x50] sm:$0xff]
          %v429 = vld [vmem:[#allocation3 + $0x58] sm:$0xff]
          %v430 = vld [vmem:[#allocation3 + $0x60] sm:$0xff]
          %v431 = vld [vmem:[#allocation3 + $0x68] sm:$0xff]
          %v432 = vld [vmem:[#allocation3 + $0x70] sm:$0xff]
          %v433 = vld [vmem:[#allocation3 + $0x78] sm:$0xff]
          %434 = vmax.xlane.f32.xlu0 %v418
          %v435 = vpop.xlane.xlu0 %434
          %436 = vmax.xlane.f32.xlu0 %v419
          %v437 = vpop.xlane.xlu0 %436
          %438 = vmax.xlane.f32.xlu0 %v420
          %v439 = vpop.xlane.xlu0 %438
          %440 = vmax.xlane.f32.xlu0 %v421
          %v441 = vpop.xlane.xlu0 %440
          %442 = vmax.xlane.f32.xlu0 %v422
          %v443 = vpop.xlane.xlu0 %442
          %444 = vmax.xlane.f32.xlu0 %v423
          %v445 = vpop.xlane.xlu0 %444
          %446 = vmax.xlane.f32.xlu0 %v424
          %v447 = vpop.xlane.xlu0 %446
          %448 = vmax.xlane.f32.xlu0 %v425
          %v449 = vpop.xlane.xlu0 %448
          %450 = vmax.xlane.f32.xlu0 %v426
          %v451 = vpop.xlane.xlu0 %450
          %452 = vmax.xlane.f32.xlu0 %v427
          %v453 = vpop.xlane.xlu0 %452
          %454 = vmax.xlane.f32.xlu0 %v428
          %v455 = vpop.xlane.xlu0 %454
          %456 = vmax.xlane.f32.xlu0 %v429
          %v457 = vpop.xlane.xlu0 %456
          %458 = vmax.xlane.f32.xlu0 %v430
          %v459 = vpop.xlane.xlu0 %458
          %460 = vmax.xlane.f32.xlu0 %v431
          %v461 = vpop.xlane.xlu0 %460
          %462 = vmax.xlane.f32.xlu0 %v432
          %v463 = vpop.xlane.xlu0 %462
          %464 = vmax.xlane.f32.xlu0 %v433
          %v465 = vpop.xlane.xlu0 %464
          %v482 = vlaneseq
          %v483 = vand.u32 %v482, 127
          %v484 = vperm.slane %v402, %v483
          %v485 = vadd.s32 %v483, 4294967288
          %v486 = vperm.slane %v403, %v485
          %vm487 = vcmask 130112
          %v488 = vsel %vm487, %v486, %v484
          %v489 = vadd.s32 %v483, 4294967280
          %v490 = vperm.slane %v404, %v489
          %vm491 = vcmask 195712
          %v492 = vsel %vm491, %v490, %v488
          %v493 = vadd.s32 %v483, 4294967272
          %v494 = vperm.slane %v405, %v493
          %vm495 = vcmask 261312
          %v496 = vsel %vm495, %v494, %v492
          %v497 = vadd.s32 %v483, 4294967264
          %v498 = vperm.slane %v406, %v497
          %vm499 = vcmask 326912
          %v500 = vsel %vm499, %v498, %v496
          %v501 = vadd.s32 %v483, 4294967256
          %v502 = vperm.slane %v407, %v501
          %vm503 = vcmask 392512
          %v504 = vsel %vm503, %v502, %v500
          %v505 = vadd.s32 %v483, 4294967248
          %v506 = vperm.slane %v408, %v505
          %vm507 = vcmask 458112
          %v508 = vsel %vm507, %v506, %v504
          %v509 = vadd.s32 %v483, 4294967240
          %v510 = vperm.slane %v409, %v509
          %vm511 = vcmask 523712
          %v512 = vsel %vm511, %v510, %v508
          %v513 = vperm.slane %v410, %v483
          %v514 = vperm.slane %v411, %v485
          %v515 = vsel %vm487, %v514, %v513
          %v516 = vperm.slane %v412, %v489
          %v517 = vsel %vm491, %v516, %v515
          %v518 = vperm.slane %v413, %v493
          %v519 = vsel %vm495, %v518, %v517
          %v520 = vperm.slane %v414, %v497
          %v521 = vsel %vm499, %v520, %v519
          %v522 = vperm.slane %v415, %v501
          %v523 = vsel %vm503, %v522, %v521
          %v524 = vperm.slane %v416, %v505
          %v525 = vsel %vm507, %v524, %v523
          %v526 = vperm.slane %v417, %v509
          %v527 = vsel %vm511, %v526, %v525
          %vm528 = vcmask 1041409
          %v529 = vsel %vm528, %v527, %v512
          %v547 = vperm.slane %v435, %v483
          %v548 = vperm.slane %v437, %v485
          %v549 = vsel %vm487, %v548, %v547
          %v550 = vperm.slane %v439, %v489
          %v551 = vsel %vm491, %v550, %v549
          %v552 = vperm.slane %v441, %v493
          %v553 = vsel %vm495, %v552, %v551
          %v554 = vperm.slane %v443, %v497
          %v555 = vsel %vm499, %v554, %v553
          %v556 = vperm.slane %v445, %v501
          %v557 = vsel %vm503, %v556, %v555
          %v558 = vperm.slane %v447, %v505
          %v559 = vsel %vm507, %v558, %v557
          %v560 = vperm.slane %v449, %v509
          %v561 = vsel %vm511, %v560, %v559
          %v562 = vperm.slane %v451, %v483
          %v563 = vperm.slane %v453, %v485
          %v564 = vsel %vm487, %v563, %v562
          %v565 = vperm.slane %v455, %v489
          %v566 = vsel %vm491, %v565, %v564
          %v567 = vperm.slane %v457, %v493
          %v568 = vsel %vm495, %v567, %v566
          %v569 = vperm.slane %v459, %v497
          %v570 = vsel %vm499, %v569, %v568
          %v571 = vperm.slane %v461, %v501
          %v572 = vsel %vm503, %v571, %v570
          %v573 = vperm.slane %v463, %v505
          %v574 = vsel %vm507, %v573, %v572
          %v575 = vperm.slane %v465, %v509
          %v576 = vsel %vm511, %v575, %v574
          %vm577 = vcmask 1043459
          %v578 = vsel %vm577, %v576, %v561
          %vm580 = vcmask 1041408
          %v581 = vsel %vm580, %v529, %v578
          %v582 = vld [vmem:[%s1] sm:$0xff]
          %v583 = vld [vmem:[%s1 + $0x8] sm:$0xff]
          %v584 = vld [vmem:[%s1 + $0x10] sm:$0xff]
          %v585 = vld [vmem:[%s1 + $0x18] sm:$0xff]
          %v586 = vld [vmem:[%s1 + $0x20] sm:$0xff]
          %v587 = vld [vmem:[%s1 + $0x28] sm:$0xff]
          %v588 = vld [vmem:[%s1 + $0x30] sm:$0xff]
          %v589 = vld [vmem:[%s1 + $0x38] sm:$0xff]
          %vm590 = vcmask 523264
          %v592 = vsel %vm590, %v581, 0
          %594 = vmatpush.msra.mxu0 0.0
          %595 = vmatpush.msra.mxu0 0.0
          %596 = vmatpush.msra.mxu0 0.0
          %597 = vmatpush.msra.mxu0 0.0
          %598 = vmatpush.msra.mxu0 0.0
          %599 = vmatpush.msra.mxu0 0.0
          %600 = vmatpush.msra.mxu0 0.0
          %601 = vmatpush.msra.mxu0 0.0
          %602 = vmatpush.msra.mxu0 %v589
          %603 = vmatpush.msra.mxu0 %v588
          %604 = vmatpush.msra.mxu0 %v587
          %605 = vmatpush.msra.mxu0 %v586
          %606 = vmatpush.msra.mxu0 %v585
          %607 = vmatpush.msra.mxu0 %v584
          %608 = vmatpush.msra.mxu0 %v583
          %609 = vmatpush.msra.mxu0 %v582
          %610 = vmatmul.f32.gmra.mxu0 %v592
          %v611 = vpop.f32.mrf.mxu0
          %v612 = vadd.f32 0.0, %v611
          %613 = vdwg.mxu0
          %v614 = vmax.f32 %v612, 0.0
          %v615 = vld [vmem:[%s2] sm:$0xf]
          %vm616 = vcmask 31744
          %v618 = vsel %vm616, %v614, 0
          %vm620 = vcmask 1043456
          %v622 = vsel %vm620, %v615, 0
          %624 = vmatpush.msra.mxu0 0.0
          %625 = vmatpush.msra.mxu0 0.0
          %626 = vmatpush.msra.mxu0 0.0
          %627 = vmatpush.msra.mxu0 0.0
          %628 = vmatpush.msra.mxu0 0.0
          %629 = vmatpush.msra.mxu0 0.0
          %630 = vmatpush.msra.mxu0 0.0
          %631 = vmatpush.msra.mxu0 0.0
          %632 = vmatpush.msra.mxu0 0.0
          %633 = vmatpush.msra.mxu0 0.0
          %634 = vmatpush.msra.mxu0 0.0
          %635 = vmatpush.msra.mxu0 0.0
          %636 = vmatpush.msra.mxu0 0.0
          %637 = vmatpush.msra.mxu0 0.0
          %638 = vmatpush.msra.mxu0 0.0
          %639 = vmatpush.msra.mxu0 %v622
          %640 = vmatmul.f32.gmra.mxu0 %v618
          %v641 = vpop.f32.mrf.mxu0
          %v642 = vadd.f32 0.0, %v641
          %643 = vdwg.mxu0
          %v645 = vrot.slane %v642, 2
          %v647 = vadd.f32 %v642, %v645
          %v648 = vxor.u32 %v647, 2147483648
          %v649 = vmul.f32 %v648, 1.442695
          %v650 = vpow.pop %v649
          %v651 = vadd.f32 %v650, 1.0
          %v652 = vrcp.pop %v651
          %v653 = vmul.f32 %v651, %v652
          %v654 = vsub.f32 1.0, %v653
          %v655 = vmul.f32 %v652, %v654
          %v656 = vadd.f32 %v652, %v655
          %vm657 = vweird.f32 %v651
          %vm658 = vweird.f32 %v652
          %vm659 = vmor %vm657, %vm658
          %v660 = vsel %vm659, %v652, %v656
          %v661 = vand.u32 2147483647, %v651
          %vm662 = vcmp.eq.f32.partialorder %v661, 8.507059e+37
          %v663 = vand.u32 %v651, 2147483648
          %v664 = vor.u32 1.1754944e-38, %v663
          %v665 = vsel %vm662, %v664, %v660
          %v666 = vmul.f32 1.0, %v665
          %v668 = vrot.slane %v666, 1
          %vm670 = vcmask 516096
          %671 = vst.msk [vmem:[#allocation7] sm:$0x1] %vm670, %v666
          %672 = vst.msk [vmem:[#allocation7 + $0x1] sm:$0x1] %vm670, %v668
        $region44: #{tpu_custom_call.1} parent=31 // pred_fallthru
          _
        // Predicated region
        $region45: #{tpu_custom_call.1} parent=31 // pred_check
          %p673 = pneg %p118
        $region46: #{tpu_custom_call.1} parent=31 // pred_check_branch
          %675 = sbr.rel (%p673) target = $region48
        $region47: #{tpu_custom_call.1} parent=31 // pred_region
          %s676 = smul.u32 2, %s22
          %678 = vsyncadd [#allocation6], 0
          %s679 = scalar_lea.hbm %s3, %s676
          %s680 = sshll.u32 [#allocation7], 4
          %s681 = int_to_ptr.vmem [resolvable:$true] %s680
          %s682 = sshll.u32 %s679, 4
          %s683 = int_to_ptr.hbm [resolvable:$true] %s682
          %688 = dma.vmem_to_hbm [thread:$0]  %s681, 32, %s683, [#allocation6], 16, 16, 1
        $region48: #{tpu_custom_call.1} parent=31 // pred_fallthru
          _
        // Predicated region
        $region49: #{tpu_custom_call.1} parent=31 // pred_check
          %p689 = pneg %p118
        $region50: #{tpu_custom_call.1} parent=31 // pred_check_branch
          %691 = sbr.rel (%p689) target = $region52
        $region51: #{tpu_custom_call.1} parent=31 // pred_region
          %693 = dma.done [#allocation6], 32
        $region52: #{tpu_custom_call.1} parent=31 // pred_fallthru
          _
      $region32: #{tpu_custom_call.1} parent=5 // pred_fallthru
        _
      %p694 = scmp.le.s32.totalorder 2, %s13
      // Predicated region
      $region53: #{tpu_custom_call.1} parent=5 // pred_check
        %p695 = pneg %p694
      $region54: #{tpu_custom_call.1} parent=5 // pred_check_branch
        %697 = sbr.rel (%p695) target = $region56
      $region55: #{tpu_custom_call.1} parent=5 // pred_region
        %s698 = ssub.s32 %s13, 2
      $region56: #{tpu_custom_call.1} parent=5 // pred_fallthru
        _
    $region6: #{tpu_custom_call.1} parent=1 // loop_footer
      %s17 = sadd.s32 1, %s13
    $region7: #{tpu_custom_call.1} parent=1 // loop_footer_branch
      %12 = sbr.rel target = $region3
    $region8: #{tpu_custom_call.1} parent=1 // loop_exit
      _
    %699 = vsyncpa [#allocation5], 1
    %s700 = scalar_lea.sflag [#allocation5], 1
    %701 = vsyncpa %s700, 1
    %702 = vsyncpa [#allocation6], 1
    %s703 = scalar_lea.sflag [#allocation6], 1
    %704 = vsyncpa %s703, 1

</llo_original>
